<compile_context>
chip_gen: v7x
topology: tpu7x:2x2x1
jax: 0.10.0
libtpu: 0.0.40
codegen_flags: <defaults>
</compile_context>

<pallas_src>
import functools

import numpy as np
import jax
import jax.numpy as jnp
from jax.experimental import pallas as pl
from jax.experimental.pallas import tpu as pltpu


_VMEM_LIMIT_BYTES = 32 * 1024 * 1024   # scoped-safe on v5e / v6e / v7x


def _round_up(x, m):
    return (x + m - 1) // m * m


def _row_tile(n_rows, d, *, max_rows=2048, byte_budget=1 << 20):
    """Row block: multiple of 8 (sublane), capped by a per-block byte budget,
    and split so the row grid has >= 2 steps when there is enough work
    (feeds both v7x TensorCores; measured-neutral on v5e/v6e)."""
    tr = (byte_budget // (d * 4)) // 8 * 8
    tr = max(8, min(tr, max_rows, _round_up(n_rows, 8)))
    if n_rows > 8 and pl.cdiv(n_rows, tr) < 2:
        tr = _round_up(pl.cdiv(n_rows, 2), 8)
    return tr


# ---------------------------------------------------------------------------
# Kernel 1: LayerNorm (annotated-transformer variant: unbiased std, std + eps)
# ---------------------------------------------------------------------------
def _layernorm_kernel(alpha_ref, beta_ref, x_ref, o_ref, *, eps, inv_dm1):
    x = x_ref[...].astype(jnp.float32)                          # (TR, D)
    mean = jnp.mean(x, axis=-1, keepdims=True)
    xc = x - mean
    var = jnp.sum(xc * xc, axis=-1, keepdims=True) * inv_dm1    # unbiased (ddof=1)
    inv = 1.0 / (jnp.sqrt(var) + eps)                           # one divide per row
    o_ref[...] = (alpha_ref[...] * (xc * inv) + beta_ref[...]).astype(o_ref.dtype)


def layer_norm(x, alpha, beta, eps=1e-6):
    orig_shape = x.shape
    D = orig_shape[-1]
    x2 = x.reshape(-1, D)
    N = x2.shape[0]
    TR = _row_tile(N, D)
    grid = (pl.cdiv(N, TR),)          # partial last block -> masked stores, no pad/slice

    out = pl.pallas_call(
        functools.partial(_layernorm_kernel, eps=float(eps),
                          inv_dm1=1.0 / max(D - 1, 1)),
        out_shape=jax.ShapeDtypeStruct((N, D), x.dtype),
        grid=grid,
        in_specs=[
            pl.BlockSpec((1, D), lambda i: (0, 0)),    # alpha (resident)
            pl.BlockSpec((1, D), lambda i: (0, 0)),    # beta  (resident)
            pl.BlockSpec((TR, D), lambda i: (i, 0)),   # x rows
        ],
        out_specs=pl.BlockSpec((TR, D), lambda i: (i, 0)),
        compiler_params=pltpu.CompilerParams(
            dimension_semantics=("parallel",),
            vmem_limit_bytes=_VMEM_LIMIT_BYTES),
    )(alpha.reshape(1, D).astype(jnp.float32),
      beta.reshape(1, D).astype(jnp.float32),
      x2)
    return out.reshape(orig_shape)


# ---------------------------------------------------------------------------
# Kernel 2: residual add (+ dropout)   out = x + dropout_p(y)
# ---------------------------------------------------------------------------
def _residual_add_kernel(x_ref, y_ref, o_ref):
    o_ref[...] = (x_ref[...].astype(jnp.float32)
                  + y_ref[...].astype(jnp.float32)).astype(o_ref.dtype)


def _residual_dropout_kernel(x_ref, y_ref, u_ref, o_ref, *, p):
    keep = u_ref[...] >= p                       # P(keep) = 1 - p
    y = jnp.where(keep, y_ref[...].astype(jnp.float32) * (1.0 / (1.0 - p)), 0.0)
    o_ref[...] = (x_ref[...].astype(jnp.float32) + y).astype(o_ref.dtype)


def residual_dropout_add(x, y, *, p=0.0, key=None):
    orig_shape = x.shape
    D = orig_shape[-1]
    x2 = x.reshape(-1, D)
    y2 = y.reshape(-1, D).astype(x.dtype)
    N = x2.shape[0]
    TR = _row_tile(N, D)
    grid = (pl.cdiv(N, TR),)
    row_spec = pl.BlockSpec((TR, D), lambda i: (i, 0))
    cparams = pltpu.CompilerParams(
        dimension_semantics=("parallel",), vmem_limit_bytes=_VMEM_LIMIT_BYTES)

    if p > 0.0:
        if key is None:
            key = jax.random.PRNGKey(0)
        # TODO(synk): replace with in-kernel pltpu.prng_seed/prng_random_bits on
        # real TPU to avoid this extra [N, D] HBM read (no interpret lowering).
        u = jax.random.uniform(key, (N, D), dtype=jnp.float32)
        out = pl.pallas_call(
            functools.partial(_residual_dropout_kernel, p=float(p)),
            out_shape=jax.ShapeDtypeStruct((N, D), x.dtype),
            grid=grid,
            in_specs=[row_spec, row_spec, row_spec],
            out_specs=row_spec,
            input_output_aliases={1: 0},         # write result over the y buffer
            compiler_params=cparams,
        )(x2, y2, u)
    else:
        out = pl.pallas_call(
            _residual_add_kernel,
            out_shape=jax.ShapeDtypeStruct((N, D), x.dtype),
            grid=grid,
            in_specs=[row_spec, row_spec],
            out_specs=row_spec,
            input_output_aliases={1: 0},
            compiler_params=cparams,
        )(x2, y2)
    return out.reshape(orig_shape)


# ---------------------------------------------------------------------------
# Fused fast path: out = x + dropout(norm(x) @ W + b)  (Linear sublayer)
# ---------------------------------------------------------------------------
def _make_fused_kernel(*, eps, inv_dm1, p, tn, ncol_blocks):
    with_dropout = p > 0.0

    def kernel(alpha_ref, beta_ref, x_ref, w_ref, b_ref, *rest):
        if with_dropout:
            u_ref, o_ref = rest
        else:
            (o_ref,) = rest
        x = x_ref[...].astype(jnp.float32)                       # (TM, D)
        mean = jnp.mean(x, axis=-1, keepdims=True)
        xc = x - mean
        var = jnp.sum(xc * xc, axis=-1, keepdims=True) * inv_dm1
        inv = 1.0 / (jnp.sqrt(var) + eps)
        normed = alpha_ref[...] * (xc * inv) + beta_ref[...]     # (TM, D)
        y = jnp.dot(normed, w_ref[...].astype(jnp.float32),
                    preferred_element_type=jnp.float32) + b_ref[...]
        if with_dropout:
            y = jnp.where(u_ref[...] >= p, y * (1.0 / (1.0 - p)), 0.0)
        if ncol_blocks == 1:
            xres = x                                             # TN == D
        else:
            col0 = pl.multiple_of(pl.program_id(1) * tn, tn)
            xres = x_ref[:, pl.ds(col0, tn)].astype(jnp.float32)
        o_ref[...] = (xres + y).astype(o_ref.dtype)

    return kernel


def sublayer_connection_fused_linear(x, w, b, alpha, beta, *, eps=1e-6, p=0.0, key=None):
    orig_shape = x.shape
    D = orig_shape[-1]
    assert w.shape == (D, D), "residual connection requires a square (D, D) projection"
    x2 = x.reshape(-1, D)
    N = x2.shape[0]

    if D % 128 == 0 and D > 512:
        TN = 512 if D % 512 == 0 else (256 if D % 256 == 0 else 128)
    else:
        TN = D
    ncol = D // TN
    TM = _row_tile(N, D, max_rows=512)
    grid = (pl.cdiv(N, TM), ncol)

    in_specs = [
        pl.BlockSpec((1, D), lambda i, j: (0, 0)),      # alpha
        pl.BlockSpec((1, D), lambda i, j: (0, 0)),      # beta
        pl.BlockSpec((TM, D), lambda i, j: (i, 0)),     # x (full row: LN + residual)
        pl.BlockSpec((D, TN), lambda i, j: (0, j)),     # W column block
        pl.BlockSpec((1, TN), lambda i, j: (0, j)),     # bias
    ]
    args = [alpha.reshape(1, D).astype(jnp.float32),
            beta.reshape(1, D).astype(jnp.float32),
            x2, w, b.reshape(1, D)]
    if p > 0.0:
        if key is None:
            key = jax.random.PRNGKey(0)
        u = jax.random.uniform(key, (N, D), dtype=jnp.float32)
        in_specs.append(pl.BlockSpec((TM, TN), lambda i, j: (i, j)))
        args.append(u)

    kernel = _make_fused_kernel(eps=float(eps), inv_dm1=1.0 / max(D - 1, 1),
                                p=float(p), tn=TN, ncol_blocks=ncol)
    out = pl.pallas_call(
        kernel,
        out_shape=jax.ShapeDtypeStruct((N, D), x.dtype),
        grid=grid,
        in_specs=in_specs,
        out_specs=pl.BlockSpec((TM, TN), lambda i, j: (i, j)),
        compiler_params=pltpu.CompilerParams(
            dimension_semantics=("parallel", "parallel"),
            vmem_limit_bytes=_VMEM_LIMIT_BYTES),
    )(*args)
    return out.reshape(orig_shape)


# ---------------------------------------------------------------------------
# Module wrapper
# ---------------------------------------------------------------------------
class SublayerConnection:
    """x + dropout(sublayer(norm(x))) built from Pallas kernels."""

    def __init__(self, size, dropout):
        self.alpha = jnp.ones((size,), jnp.float32)
        self.beta = jnp.zeros((size,), jnp.float32)
        self.eps = 1e-6
        self.p = float(dropout)

    def __call__(self, x, sublayer, *, training=True, dropout_key=None):
        normed = layer_norm(x, self.alpha, self.beta, self.eps)
        # TODO(synk): arbitrary `sublayer` callables run as plain JAX between
        # the two Pallas kernels; use `fused_linear` for the Linear case.
        y = sublayer(normed)
        p = self.p if training else 0.0
        return residual_dropout_add(x, y, p=p, key=dropout_key)

    def fused_linear(self, x, w, b, *, training=True, dropout_key=None):
        p = self.p if training else 0.0
        return sublayer_connection_fused_linear(
            x, w, b, self.alpha, self.beta, eps=self.eps, p=p, key=dropout_key)


# ---------------------------------------------------------------------------
# Self-test
# ---------------------------------------------------------------------------
if __name__ == "__main__":
    B, S, D = 2, 8, 128
    RTOL = ATOL = 2e-3        # leaves room for TPU matmul pass precision

    key = jax.random.PRNGKey(0)
    kx, kw, kb, kx2 = jax.random.split(key, 4)
    x = jax.random.normal(kx, (B, S, D), dtype=jnp.float32)
    W = jax.random.normal(kw, (D, D), dtype=jnp.float32) * 0.02
    bvec = jax.random.normal(kb, (D,), dtype=jnp.float32) * 0.02

    def sublayer(h):
        return jnp.dot(h, W, precision=jax.lax.Precision.HIGHEST,
                       preferred_element_type=jnp.float32) + bvec

    def np_ref(xa):
        xa = np.asarray(xa, np.float32)
        mean = xa.mean(-1, keepdims=True)
        std = xa.std(-1, ddof=1, keepdims=True)          # torch.std (unbiased)
        normed = (xa - mean) / (std + 1e-6)              # alpha=1, beta=0
        return xa + normed @ np.asarray(W) + np.asarray(bvec)

    # --- deterministic path (dropout p = 0): generic and fused kernels -----
    module = SublayerConnection(D, dropout=0.0)
    out = jax.block_until_ready(jax.jit(lambda xx: module(xx, sublayer))(x))
    assert out.shape == (B, S, D)
    np.testing.assert_allclose(np.asarray(out), np_ref(x), rtol=RTOL, atol=ATOL)

    out_fused = jax.block_until_ready(
        jax.jit(lambda xx: module.fused_linear(xx, W, bvec))(x))
    np.testing.assert_allclose(np.asarray(out_fused), np_ref(x), rtol=RTOL, atol=ATOL)

    # --- ragged row count: exercises partial last block (no pad / no slice) -
    x_odd = jax.random.normal(kx2, (3, 5, D), dtype=jnp.float32)
    out_odd = jax.block_until_ready(module(x_odd, sublayer))
    np.testing.assert_allclose(np.asarray(out_odd), np_ref(x_odd), rtol=RTOL, atol=ATOL)
    out_odd_f = jax.block_until_ready(module.fused_linear(x_odd, W, bvec))
    np.testing.assert_allclose(np.asarray(out_odd_f), np_ref(x_odd), rtol=RTOL, atol=ATOL)

    # --- stochastic dropout path (training) + eval-mode path ---------------
    module_p = SublayerConnection(D, dropout=0.5)
    kd = jax.random.PRNGKey(123)
    out_p = jax.block_until_ready(module_p(x, sublayer, dropout_key=kd))
    out_pf = jax.block_until_ready(module_p.fused_linear(x, W, bvec, dropout_key=kd))
    assert out_p.shape == (B, S, D) and out_pf.shape == (B, S, D)
    assert bool(jnp.all(jnp.isfinite(out_p))) and bool(jnp.all(jnp.isfinite(out_pf)))
    # same key => same mask => generic and fused dropout paths agree
    np.testing.assert_allclose(np.asarray(out_p), np.asarray(out_pf),
                               rtol=5e-3, atol=5e-3)
    # eval mode disables dropout
    out_eval = jax.block_until_ready(module_p(x, sublayer, training=False))
    np.testing.assert_allclose(np.asarray(out_eval), np_ref(x), rtol=RTOL, atol=ATOL)

    print("KERNEL_OK")
</pallas_src>

<mosaic_0001>
module attributes {stable_mosaic.version = 11 : i64} {
  func.func @_residual_add_kernel(%arg0: i32, %arg1: memref<8x128xf32, #tpu.memory_space<vmem>>, %arg2: memref<8x128xf32, #tpu.memory_space<vmem>>, %arg3: memref<8x128xf32, #tpu.memory_space<vmem>>) attributes {dimension_semantics = [#tpu.dimension_semantics<parallel>], iteration_bounds = array<i64: 2>, scalar_prefetch = 0 : i64, scratch_operands = 0 : i64, tpu.core_type = #tpu.core_type<tc>, window_params = [{transform_indices = @transform_0, window_bounds = array<i64: 8, 128>}, {transform_indices = @transform_1, window_bounds = array<i64: 8, 128>}, {transform_indices = @transform_2, window_bounds = array<i64: 8, 128>}]} {
    %c0 = arith.constant 0 : index
    %c0_0 = arith.constant 0 : index
    %0 = vector.load %arg1[%c0, %c0_0] : memref<8x128xf32, #tpu.memory_space<vmem>>, vector<8x128xf32>
    %c0_1 = arith.constant 0 : index
    %c0_2 = arith.constant 0 : index
    %1 = vector.load %arg2[%c0_1, %c0_2] : memref<8x128xf32, #tpu.memory_space<vmem>>, vector<8x128xf32>
    %2 = arith.addf %0, %1 : vector<8x128xf32>
    %c0_3 = arith.constant 0 : index
    %c0_4 = arith.constant 0 : index
    %3 = vector.load %arg3[%c0_3, %c0_4] : memref<8x128xf32, #tpu.memory_space<vmem>>, vector<8x128xf32>
    tpu.vector_store %arg3[%c0_3, %c0_4], %2 {strides = array<i32>} : memref<8x128xf32, #tpu.memory_space<vmem>>, vector<8x128xf32>,
    return
  }
  func.func @transform_0(%arg0: i32) -> (i32, i32) {
    %c0_i32 = arith.constant 0 : i32
    %c0_i32_0 = arith.constant 0 : i32
    return %arg0, %c0_i32 : i32, i32
  }
  func.func @transform_1(%arg0: i32) -> (i32, i32) {
    %c0_i32 = arith.constant 0 : i32
    %c0_i32_0 = arith.constant 0 : i32
    return %arg0, %c0_i32 : i32, i32
  }
  func.func @transform_2(%arg0: i32) -> (i32, i32) {
    %c0_i32 = arith.constant 0 : i32
    %c0_i32_0 = arith.constant 0 : i32
    return %arg0, %c0_i32 : i32, i32
  }
}

module attributes {stable_mosaic.version = 11 : i64} {
  func.func @_layernorm_kernel(%arg0: i32, %arg1: memref<1x128xf32, #tpu.memory_space<vmem>>, %arg2: memref<1x128xf32, #tpu.memory_space<vmem>>, %arg3: memref<8x128xf32, #tpu.memory_space<vmem>>, %arg4: memref<8x128xf32, #tpu.memory_space<vmem>>) attributes {dimension_semantics = [#tpu.dimension_semantics<parallel>], iteration_bounds = array<i64: 2>, scalar_prefetch = 0 : i64, scratch_operands = 0 : i64, tpu.core_type = #tpu.core_type<tc>, window_params = [{pipeline_mode = #tpu.pipeline_mode<synchronous>, transform_indices = @transform_0, window_bounds = array<i64: 1, 128>}, {pipeline_mode = #tpu.pipeline_mode<synchronous>, transform_indices = @transform_1, window_bounds = array<i64: 1, 128>}, {transform_indices = @transform_2, window_bounds = array<i64: 8, 128>}, {transform_indices = @transform_3, window_bounds = array<i64: 8, 128>}]} {
    %c0 = arith.constant 0 : index
    %c0_0 = arith.constant 0 : index
    %0 = vector.load %arg3[%c0, %c0_0] : memref<8x128xf32, #tpu.memory_space<vmem>>, vector<8x128xf32>
    %cst = arith.constant dense<0.000000e+00> : vector<8xf32>
    %1 = vector.multi_reduction <add>, %0, %cst [1] : vector<8x128xf32> to vector<8xf32>
    %2 = vector.shape_cast %1 : vector<8xf32> to vector<8x1xf32>
    %cst_1 = arith.constant 1.280000e+02 : f32
    %3 = vector.broadcast %cst_1 : f32 to vector<8x1xf32>
    %4 = arith.divf %2, %3 : vector<8x1xf32>
    %5 = vector.broadcast %4 : vector<8x1xf32> to vector<8x128xf32>
    %6 = arith.subf %0, %5 : vector<8x128xf32>
    %7 = arith.mulf %6, %6 : vector<8x128xf32>
    %cst_2 = arith.constant dense<0.000000e+00> : vector<8xf32>
    %8 = vector.multi_reduction <add>, %7, %cst_2 [1] : vector<8x128xf32> to vector<8xf32>
    %9 = vector.shape_cast %8 : vector<8xf32> to vector<8x1xf32>
    %cst_3 = arith.constant 0.00787401571 : f32
    %10 = vector.broadcast %cst_3 : f32 to vector<8x1xf32>
    %11 = arith.mulf %9, %10 : vector<8x1xf32>
    %12 = math.sqrt %11 : vector<8x1xf32>
    %cst_4 = arith.constant 9.99999997E-7 : f32
    %13 = vector.broadcast %cst_4 : f32 to vector<8x1xf32>
    %14 = arith.addf %12, %13 : vector<8x1xf32>
    %cst_5 = arith.constant 1.000000e+00 : f32
    %15 = vector.broadcast %cst_5 : f32 to vector<8x1xf32>
    %16 = arith.divf %15, %14 : vector<8x1xf32>
    %c0_6 = arith.constant 0 : index
    %c0_7 = arith.constant 0 : index
    %17 = vector.load %arg1[%c0_6, %c0_7] : memref<1x128xf32, #tpu.memory_space<vmem>>, vector<1x128xf32>
    %18 = vector.broadcast %16 : vector<8x1xf32> to vector<8x128xf32>
    %19 = arith.mulf %6, %18 : vector<8x128xf32>
    %20 = vector.broadcast %17 : vector<1x128xf32> to vector<8x128xf32>
    %21 = arith.mulf %20, %19 : vector<8x128xf32>
    %c0_8 = arith.constant 0 : index
    %c0_9 = arith.constant 0 : index
    %22 = vector.load %arg2[%c0_8, %c0_9] : memref<1x128xf32, #tpu.memory_space<vmem>>, vector<1x128xf32>
    %23 = vector.broadcast %22 : vector<1x128xf32> to vector<8x128xf32>
    %24 = arith.addf %21, %23 : vector<8x128xf32>
    %c0_10 = arith.constant 0 : index
    %c0_11 = arith.constant 0 : index
    %25 = vector.load %arg4[%c0_10, %c0_11] : memref<8x128xf32, #tpu.memory_space<vmem>>, vector<8x128xf32>
    tpu.vector_store %arg4[%c0_10, %c0_11], %24 {strides = array<i32>} : memref<8x128xf32, #tpu.memory_space<vmem>>, vector<8x128xf32>,
    return
  }
  func.func @transform_0(%arg0: i32) -> (i32, i32) {
    %c0_i32 = arith.constant 0 : i32
    %c0_i32_0 = arith.constant 0 : i32
    %c0_i32_1 = arith.constant 0 : i32
    return %c0_i32, %c0_i32_0 : i32, i32
  }
  func.func @transform_1(%arg0: i32) -> (i32, i32) {
    %c0_i32 = arith.constant 0 : i32
    %c0_i32_0 = arith.constant 0 : i32
    %c0_i32_1 = arith.constant 0 : i32
    return %c0_i32, %c0_i32_0 : i32, i32
  }
  func.func @transform_2(%arg0: i32) -> (i32, i32) {
    %c0_i32 = arith.constant 0 : i32
    %c0_i32_0 = arith.constant 0 : i32
    return %arg0, %c0_i32 : i32, i32
  }
  func.func @transform_3(%arg0: i32) -> (i32, i32) {
    %c0_i32 = arith.constant 0 : i32
    %c0_i32_0 = arith.constant 0 : i32
    return %arg0, %c0_i32 : i32, i32
  }
}

</mosaic_0001>

<llo_original>
// kernel: _lambda_.2
$region0: #{_lambda_.2}
  #allocation0 [shape = 'u32[]', space=smem, size = 0x4, offset = 0x4, fixed_abs, tag = 'smem constant byte address 0x4 - core index']
  #allocation1 [shape = 'u32[144,128]{1,0:T(1,128)}', space=vmem, size = 0x12000, scoped, tag = 'internal scratch']
  %s0 = inlined_call_operand.vmem [shape: f32[1,128], index: 0, kind: input, shape index: {}]
  %s1 = inlined_call_operand.vmem [shape: f32[1,128], index: 1, kind: input, shape index: {}]
  %s2 = inlined_call_operand.hbm [shape: f32[16,128], index: 2, kind: input, shape index: {}]
  %s3 = inlined_call_operand.vmem [shape: f32[16,128], index: 3, kind: output, shape index: {}]
  %s4 = sld [smem:[#allocation0]]
  $region49: #{_lambda_.2} parent=0
    _
  %s6 = ssub.s32 1, %s4
  %s7 = scalar_select 0, %s6, %s4
  $region1: #{_lambda_.2} parent=0
    #allocation2 [shape = 'u8[8192]{0}', space=vmem, size = 0x2000, scoped, tag = 'input window, operand 2']
    #allocation3 [shape = 's32[2]{0}', space=sflag, size = 0x8, scoped, tag = 'scoped memory for _lambda_.2']
    %8 = vsyncpa [#allocation3], 0
    %s9 = scalar_lea.sflag [#allocation3], 1
    %10 = vsyncpa %s9, 0
    loop: start=0, step=1, limit=4
    $region2: #{_lambda_.2} parent=1 // loop_pre_header
      _
    $region3: #{_lambda_.2} parent=1 // loop_header
      %s12 = sphi 0, %s16
      %p13 = scmp.ge.s32.totalorder %s12, 4
      %s20 = sphi 0, %s20
      %s22 = sphi 0, %s20
      %s23 = sphi 0, %s22
      %s37 = sphi 0, %s23
      %s41 = sphi 0, %s41
      %s43 = sphi 0, %s41
      %s44 = sphi 0, %s43
      %s58 = sphi 0, %s44
      %s64 = sphi 0, %s66
      %s67 = sphi 0, %s64
      %s68 = sphi 0, %s67
      %s84 = sphi 0, %s68
      %s90 = sphi 0, %s92
      %s93 = sphi 0, %s90
      %s94 = sphi 0, %s93
      %s110 = sphi 0, %s94
    $region4: #{_lambda_.2} parent=1 // loop_header_branch
      %15 = sbr.rel (%p13) target = $region8
    $region5: #{_lambda_.2} parent=1 // loop_body
      %s17 = ssub.s32 %s12, 1
      %s18 = ssub.s32 %s12, 2
      %s19 = sadd.s32 %s12, 1
      %s21 = sadd.s32 %s20, 1
      %p24 = scmp.eq.s32.totalorder %s12, 1
      %p25 = scmp.ne.s32.totalorder %s20, %s22
      %p26 = scmp.eq.s32.totalorder %s12, 0
      %p27 = por %p25, %p26
      %p28 = scmp.ne.s32.totalorder %s20, %s22
      %p29 = scmp.eq.s32.totalorder %s17, 1
      %p30 = por %p28, %p29
      %p31 = scmp.ne.s32.totalorder %s22, %s23
      %p32 = scmp.eq.s32.totalorder %s17, 0
      %p33 = por %p31, %p32
      %p34 = scmp.ne.s32.totalorder %s22, %s23
      %p35 = scmp.eq.s32.totalorder %s18, 1
      %p36 = por %p34, %p35
      %p38 = scmp.ne.s32.totalorder %s23, %s37
      %p39 = scmp.eq.s32.totalorder %s18, 0
      %p40 = por %p38, %p39
      %s42 = sadd.s32 %s41, 1
      %p45 = scmp.eq.s32.totalorder %s12, 1
      %p46 = scmp.ne.s32.totalorder %s41, %s43
      %p47 = scmp.eq.s32.totalorder %s12, 0
      %p48 = por %p46, %p47
      %p49 = scmp.ne.s32.totalorder %s41, %s43
      %p50 = scmp.eq.s32.totalorder %s17, 1
      %p51 = por %p49, %p50
      %p52 = scmp.ne.s32.totalorder %s43, %s44
      %p53 = scmp.eq.s32.totalorder %s17, 0
      %p54 = por %p52, %p53
      %p55 = scmp.ne.s32.totalorder %s43, %s44
      %p56 = scmp.eq.s32.totalorder %s18, 1
      %p57 = por %p55, %p56
      %p59 = scmp.ne.s32.totalorder %s44, %s58
      %p60 = scmp.eq.s32.totalorder %s18, 0
      %p61 = por %p59, %p60
      %s62 = ssub.s32 %s12, %s19
      %p63 = scmp.eq.s32.totalorder %s62, 0
      %s65 = sadd.s32 %s64, 1
      %s66 = scalar_select %p63, %s64, %s65
      %p69 = pneg %p63
      %p70 = scmp.eq.s32.totalorder %s12, 1
      %p71 = por %p69, %p70
      %p72 = scmp.ne.s32.totalorder %s64, %s67
      %p73 = scmp.eq.s32.totalorder %s12, 0
      %p74 = por %p72, %p73
      %p75 = scmp.ne.s32.totalorder %s64, %s67
      %p76 = scmp.eq.s32.totalorder %s17, 1
      %p77 = por %p75, %p76
      %p78 = scmp.ne.s32.totalorder %s67, %s68
      %p79 = scmp.eq.s32.totalorder %s17, 0
      %p80 = por %p78, %p79
      %p81 = scmp.ne.s32.totalorder %s67, %s68
      %p82 = scmp.eq.s32.totalorder %s18, 1
      %p83 = por %p81, %p82
      %p85 = scmp.ne.s32.totalorder %s68, %s84
      %p86 = scmp.eq.s32.totalorder %s18, 0
      %p87 = por %p85, %p86
      %s88 = ssub.s32 %s12, %s19
      %p89 = scmp.eq.s32.totalorder %s88, 0
      %s91 = sadd.s32 %s90, 1
      %s92 = scalar_select %p89, %s90, %s91
      %p95 = pneg %p89
      %p96 = scmp.eq.s32.totalorder %s12, 1
      %p97 = por %p95, %p96
      %p98 = scmp.ne.s32.totalorder %s90, %s93
      %p99 = scmp.eq.s32.totalorder %s12, 0
      %p100 = por %p98, %p99
      %p101 = scmp.ne.s32.totalorder %s90, %s93
      %p102 = scmp.eq.s32.totalorder %s17, 1
      %p103 = por %p101, %p102
      %p104 = scmp.ne.s32.totalorder %s93, %s94
      %p105 = scmp.eq.s32.totalorder %s17, 0
      %p106 = por %p104, %p105
      %p107 = scmp.ne.s32.totalorder %s93, %s94
      %p108 = scmp.eq.s32.totalorder %s18, 1
      %p109 = por %p107, %p108
      %p111 = scmp.ne.s32.totalorder %s94, %s110
      %p112 = scmp.eq.s32.totalorder %s18, 0
      %p113 = por %p111, %p112
      %p114 = scmp.le.s32.totalorder 1, %s12
      %p115 = scmp.lt.s32.totalorder %s12, 3
      %p116 = pnand %p114, %p115
      %p117 = pneg %p116
      // Predicated region
      $region9: #{_lambda_.2} parent=5 // pred_check
        _
      $region10: #{_lambda_.2} parent=5 // pred_check_branch
        %119 = sbr.rel (%p116) target = $region12
      $region11: #{_lambda_.2} parent=5 // pred_region
        %s120 = ssub.s32 %s12, 1
        // Predicated region
        $region13: #{_lambda_.2} parent=11 // pred_check
          %p121 = pneg %p33
        $region14: #{_lambda_.2} parent=11 // pred_check_branch
          %123 = sbr.rel (%p121) target = $region16
        $region15: #{_lambda_.2} parent=11 // pred_region
          _
        $region16: #{_lambda_.2} parent=11 // pred_fallthru
          _
        // Predicated region
        $region17: #{_lambda_.2} parent=11 // pred_check
          %p124 = pneg %p54
        $region18: #{_lambda_.2} parent=11 // pred_check_branch
          %126 = sbr.rel (%p124) target = $region20
        $region19: #{_lambda_.2} parent=11 // pred_region
          _
        $region20: #{_lambda_.2} parent=11 // pred_fallthru
          _
      $region12: #{_lambda_.2} parent=5 // pred_fallthru
        _
      %p127 = scmp.lt.s32.totalorder %s12, 2
      // Predicated region
      $region21: #{_lambda_.2} parent=5 // pred_check
        %p128 = pneg %p127
      $region22: #{_lambda_.2} parent=5 // pred_check_branch
        %130 = sbr.rel (%p128) target = $region24
      $region23: #{_lambda_.2} parent=5 // pred_region
        // Predicated region
        $region25: #{_lambda_.2} parent=23 // pred_check
          %p131 = pneg %p74
        $region26: #{_lambda_.2} parent=23 // pred_check_branch
          %133 = sbr.rel (%p131) target = $region28
        $region27: #{_lambda_.2} parent=23 // pred_region
          %s134 = sand.u32 %s64, 1
          %s135 = scalar_lea.sflag [#allocation3], %s134
          %s136 = sand.u32 %s64, 1
          %s137 = smul.addr %s136, 8
          %s138 = scalar_lea.vmem [#allocation2], %s137
          %s140 = ssub.s32 128, 128
          %141 = vsyncadd %s135, %s140
          %s142 = smul.addr %s12, 128
          %s143 = scalar_lea.hbm %s2, %s142
          %s145 = sshll.u32 %s138, 4
          %s146 = int_to_ptr.vmem [resolvable:$true] %s145
          %148 = dma.hbm_to_vmem [thread:$0]  %s143, 128, %s146, %s135
        $region28: #{_lambda_.2} parent=23 // pred_fallthru
          _
      $region24: #{_lambda_.2} parent=5 // pred_fallthru
        _
      %p149 = scmp.le.s32.totalorder 1, %s12
      %p150 = scmp.lt.s32.totalorder %s12, 3
      %p151 = pnand %p149, %p150
      %p152 = pneg %p151
      // Predicated region
      $region29: #{_lambda_.2} parent=5 // pred_check
        _
      $region30: #{_lambda_.2} parent=5 // pred_check_branch
        %154 = sbr.rel (%p151) target = $region32
      $region31: #{_lambda_.2} parent=5 // pred_region
        %s155 = ssub.s32 %s12, 1
        %s156 = sand.u32 %s67, 1
        %s157 = scalar_lea.sflag [#allocation3], %s156
        %s158 = sand.u32 %s67, 1
        %s159 = smul.addr %s158, 8
        %s160 = scalar_lea.vmem [#allocation2], %s159
        // Predicated region
        $region33: #{_lambda_.2} parent=31 // pred_check
          %p161 = pneg %p80
        $region34: #{_lambda_.2} parent=31 // pred_check_branch
          %163 = sbr.rel (%p161) target = $region36
        $region35: #{_lambda_.2} parent=31 // pred_region
          %164 = dma.done %s157, 128
        $region36: #{_lambda_.2} parent=31 // pred_fallthru
          _
        %p165 = pneg %p33
        %p166 = pneg %p30
        %p167 = pneg %p54
        %p168 = pneg %p51
        %s169 = sand.u32 %s67, 1
        %s170 = scalar_lea.sflag [#allocation3], %s169
        %s171 = sand.u32 %s67, 1
        %s172 = smul.addr %s171, 8
        %s173 = scalar_lea.vmem [#allocation2], %s172
        %p174 = pneg %p80
        %p175 = pneg %p77
        %p176 = pneg %p106
        %p177 = pneg %p103
        %p178 = scmp.lt.s32.totalorder %s17, 1
        %s179 = scalar_select %p178, %s17, 1
        %s180 = smul.addr %s179, 8
        %s181 = scalar_lea.vmem %s3, %s180
        %p182 = scmp.lt.s32.totalorder %s17, 1
        %s183 = scalar_select %p182, %s17, 1
        %s184 = smul.addr %s183, 8
        %s185 = scalar_lea.vmem %s3, %s184
        %v186 = vld [vmem:[%s160] sm:$0xff]
        %187 = vadd.xlane.f32.xlu0 %v186
        %v188 = vpop.xlane.xlu0 %187
        %v189 = vrcp.pop 128.0
        %v190 = vmul.f32 %v188, %v189
        %v191 = vsub.f32 %v186, %v190
        %v192 = vmul.f32 %v191, %v191
        %193 = vadd.xlane.f32.xlu0 %v192
        %v194 = vpop.xlane.xlu0 %193
        %v195 = vmul.f32 %v194, 0.007874016
        %v196 = vrsqrt.pop %v195
        %v197 = vmul.f32 %v195, %v196
        %vm198 = vcmp.eq.f32.partialorder %v195, inf
        %v199 = vsel %vm198, %v195, %v197
        %vm200 = vcmp.eq.f32.partialorder %v195, 0.0
        %v201 = vand.u32 %v195, 2147483648
        %v202 = vsel %vm200, %v201, %v199
        %v203 = vadd.f32 %v202, 1e-06
        %v204 = vrcp.pop %v203
        %v205 = vmul.f32 1.0, %v204
        %v206 = vld [vmem:[%s0] sm:$0x1]
        %v207 = vmul.f32 %v191, %v205
        %v209 = vlaneseq
        %v210 = vshrl.u32 %v209, 7
        %v211 = vsub.s32 0, %v210
        %v212 = vrot.slane %v206, %v211
        %v214 = vmul.f32 %v212, %v207
        %v215 = vld [vmem:[%s1] sm:$0x1]
        %v217 = vlaneseq
        %v218 = vshrl.u32 %v217, 7
        %v219 = vsub.s32 0, %v218
        %v220 = vrot.slane %v215, %v219
        %v222 = vadd.f32 %v214, %v220
        %223 = vst [vmem:[%s185] sm:$0xff] %v222
        %p224 = scmp.lt.s32.totalorder %s17, 1
        %s225 = scalar_select %p224, %s17, 1
        %s226 = smul.addr %s225, 8
        %s227 = scalar_lea.vmem %s3, %s226
        // Predicated region
        $region37: #{_lambda_.2} parent=31 // pred_check
          %p228 = pneg %p103
        $region38: #{_lambda_.2} parent=31 // pred_check_branch
          %230 = sbr.rel (%p228) target = $region40
        $region39: #{_lambda_.2} parent=31 // pred_region
          _
        $region40: #{_lambda_.2} parent=31 // pred_fallthru
          _
      $region32: #{_lambda_.2} parent=5 // pred_fallthru
        _
      %p231 = scmp.le.s32.totalorder 2, %s12
      // Predicated region
      $region41: #{_lambda_.2} parent=5 // pred_check
        %p232 = pneg %p231
      $region42: #{_lambda_.2} parent=5 // pred_check_branch
        %234 = sbr.rel (%p232) target = $region44
      $region43: #{_lambda_.2} parent=5 // pred_region
        %s235 = ssub.s32 %s12, 2
        // Predicated region
        $region45: #{_lambda_.2} parent=43 // pred_check
          %p236 = pneg %p109
        $region46: #{_lambda_.2} parent=43 // pred_check_branch
          %238 = sbr.rel (%p236) target = $region48
        $region47: #{_lambda_.2} parent=43 // pred_region
          %p239 = scmp.lt.s32.totalorder %s18, 1
          %s240 = scalar_select %p239, %s18, 1
          %s241 = smul.addr %s240, 8
          %s242 = scalar_lea.vmem %s3, %s241
        $region48: #{_lambda_.2} parent=43 // pred_fallthru
          _
      $region44: #{_lambda_.2} parent=5 // pred_fallthru
        _
    $region6: #{_lambda_.2} parent=1 // loop_footer
      %s16 = sadd.s32 1, %s12
    $region7: #{_lambda_.2} parent=1 // loop_footer_branch
      %11 = sbr.rel target = $region3
    $region8: #{_lambda_.2} parent=1 // loop_exit
      _
    %243 = vsyncpa [#allocation3], 1
    %s244 = scalar_lea.sflag [#allocation3], 1
    %245 = vsyncpa %s244, 1

// kernel: _lambda_.3
$region0: #{_lambda_.3}
  #allocation0 [shape = 'u32[]', space=smem, size = 0x4, offset = 0x4, fixed_abs, tag = 'smem constant byte address 0x4 - core index']
  #allocation1 [shape = 'u32[144,128]{1,0:T(1,128)}', space=vmem, size = 0x12000, scoped, tag = 'internal scratch']
  %s0 = inlined_call_operand.vmem [shape: f32[16,128], index: 0, kind: input, shape index: {}]
  %s1 = inlined_call_operand.vmem [shape: f32[16,128], index: 1, kind: input, shape index: {}, may-alias: {1,2}]
  %s2 = inlined_call_operand.vmem [shape: f32[16,128], index: 2, kind: output, shape index: {}, may-alias: {1,2}]
  %s3 = sld [smem:[#allocation0]]
  $region41: #{_lambda_.3} parent=0
    _
  %s5 = ssub.s32 1, %s3
  %s6 = scalar_select 0, %s5, %s3
  loop: start=0, step=1, limit=4
  $region2: #{_lambda_.3} parent=0 // loop_pre_header
    _
  $region3: #{_lambda_.3} parent=0 // loop_header
    %s8 = sphi 0, %s12
    %p9 = scmp.ge.s32.totalorder %s8, 4
    %s18 = sphi 0, %s20
    %s21 = sphi 0, %s18
    %s22 = sphi 0, %s21
    %s38 = sphi 0, %s22
    %s44 = sphi 0, %s46
    %s47 = sphi 0, %s44
    %s48 = sphi 0, %s47
    %s64 = sphi 0, %s48
    %s70 = sphi 0, %s72
    %s73 = sphi 0, %s70
    %s74 = sphi 0, %s73
    %s90 = sphi 0, %s74
  $region4: #{_lambda_.3} parent=0 // loop_header_branch
    %11 = sbr.rel (%p9) target = $region8
  $region5: #{_lambda_.3} parent=0 // loop_body
    %s13 = ssub.s32 %s8, 1
    %s14 = ssub.s32 %s8, 2
    %s15 = sadd.s32 %s8, 1
    %s16 = ssub.s32 %s8, %s15
    %p17 = scmp.eq.s32.totalorder %s16, 0
    %s19 = sadd.s32 %s18, 1
    %s20 = scalar_select %p17, %s18, %s19
    %p23 = pneg %p17
    %p24 = scmp.eq.s32.totalorder %s8, 1
    %p25 = por %p23, %p24
    %p26 = scmp.ne.s32.totalorder %s18, %s21
    %p27 = scmp.eq.s32.totalorder %s8, 0
    %p28 = por %p26, %p27
    %p29 = scmp.ne.s32.totalorder %s18, %s21
    %p30 = scmp.eq.s32.totalorder %s13, 1
    %p31 = por %p29, %p30
    %p32 = scmp.ne.s32.totalorder %s21, %s22
    %p33 = scmp.eq.s32.totalorder %s13, 0
    %p34 = por %p32, %p33
    %p35 = scmp.ne.s32.totalorder %s21, %s22
    %p36 = scmp.eq.s32.totalorder %s14, 1
    %p37 = por %p35, %p36
    %p39 = scmp.ne.s32.totalorder %s22, %s38
    %p40 = scmp.eq.s32.totalorder %s14, 0
    %p41 = por %p39, %p40
    %s42 = ssub.s32 %s8, %s15
    %p43 = scmp.eq.s32.totalorder %s42, 0
    %s45 = sadd.s32 %s44, 1
    %s46 = scalar_select %p43, %s44, %s45
    %p49 = pneg %p43
    %p50 = scmp.eq.s32.totalorder %s8, 1
    %p51 = por %p49, %p50
    %p52 = scmp.ne.s32.totalorder %s44, %s47
    %p53 = scmp.eq.s32.totalorder %s8, 0
    %p54 = por %p52, %p53
    %p55 = scmp.ne.s32.totalorder %s44, %s47
    %p56 = scmp.eq.s32.totalorder %s13, 1
    %p57 = por %p55, %p56
    %p58 = scmp.ne.s32.totalorder %s47, %s48
    %p59 = scmp.eq.s32.totalorder %s13, 0
    %p60 = por %p58, %p59
    %p61 = scmp.ne.s32.totalorder %s47, %s48
    %p62 = scmp.eq.s32.totalorder %s14, 1
    %p63 = por %p61, %p62
    %p65 = scmp.ne.s32.totalorder %s48, %s64
    %p66 = scmp.eq.s32.totalorder %s14, 0
    %p67 = por %p65, %p66
    %s68 = ssub.s32 %s8, %s15
    %p69 = scmp.eq.s32.totalorder %s68, 0
    %s71 = sadd.s32 %s70, 1
    %s72 = scalar_select %p69, %s70, %s71
    %p75 = pneg %p69
    %p76 = scmp.eq.s32.totalorder %s8, 1
    %p77 = por %p75, %p76
    %p78 = scmp.ne.s32.totalorder %s70, %s73
    %p79 = scmp.eq.s32.totalorder %s8, 0
    %p80 = por %p78, %p79
    %p81 = scmp.ne.s32.totalorder %s70, %s73
    %p82 = scmp.eq.s32.totalorder %s13, 1
    %p83 = por %p81, %p82
    %p84 = scmp.ne.s32.totalorder %s73, %s74
    %p85 = scmp.eq.s32.totalorder %s13, 0
    %p86 = por %p84, %p85
    %p87 = scmp.ne.s32.totalorder %s73, %s74
    %p88 = scmp.eq.s32.totalorder %s14, 1
    %p89 = por %p87, %p88
    %p91 = scmp.ne.s32.totalorder %s74, %s90
    %p92 = scmp.eq.s32.totalorder %s14, 0
    %p93 = por %p91, %p92
    %p94 = scmp.le.s32.totalorder 1, %s8
    %p95 = scmp.lt.s32.totalorder %s8, 3
    %p96 = pnand %p94, %p95
    %p97 = pneg %p96
    // Predicated region
    $region9: #{_lambda_.3} parent=5 // pred_check
      _
    $region10: #{_lambda_.3} parent=5 // pred_check_branch
      %99 = sbr.rel (%p96) target = $region12
    $region11: #{_lambda_.3} parent=5 // pred_region
      %s100 = ssub.s32 %s8, 1
    $region12: #{_lambda_.3} parent=5 // pred_fallthru
      _
    %p101 = scmp.lt.s32.totalorder %s8, 2
    // Predicated region
    $region13: #{_lambda_.3} parent=5 // pred_check
      %p102 = pneg %p101
    $region14: #{_lambda_.3} parent=5 // pred_check_branch
      %104 = sbr.rel (%p102) target = $region16
    $region15: #{_lambda_.3} parent=5 // pred_region
      // Predicated region
      $region17: #{_lambda_.3} parent=15 // pred_check
        %p105 = pneg %p28
      $region18: #{_lambda_.3} parent=15 // pred_check_branch
        %107 = sbr.rel (%p105) target = $region20
      $region19: #{_lambda_.3} parent=15 // pred_region
        %p108 = scmp.lt.s32.totalorder %s8, 1
        %s109 = scalar_select %p108, %s8, 1
        %s110 = smul.addr %s109, 8
        %s111 = scalar_lea.vmem %s0, %s110
      $region20: #{_lambda_.3} parent=15 // pred_fallthru
        _
      // Predicated region
      $region21: #{_lambda_.3} parent=15 // pred_check
        %p112 = pneg %p54
      $region22: #{_lambda_.3} parent=15 // pred_check_branch
        %114 = sbr.rel (%p112) target = $region24
      $region23: #{_lambda_.3} parent=15 // pred_region
        %p115 = scmp.lt.s32.totalorder %s8, 1
        %s116 = scalar_select %p115, %s8, 1
        %s117 = smul.addr %s116, 8
        %s118 = scalar_lea.vmem %s1, %s117
      $region24: #{_lambda_.3} parent=15 // pred_fallthru
        _
    $region16: #{_lambda_.3} parent=5 // pred_fallthru
      _
    %p119 = scmp.le.s32.totalorder 1, %s8
    %p120 = scmp.lt.s32.totalorder %s8, 3
    %p121 = pnand %p119, %p120
    %p122 = pneg %p121
    // Predicated region
    $region25: #{_lambda_.3} parent=5 // pred_check
      _
    $region26: #{_lambda_.3} parent=5 // pred_check_branch
      %124 = sbr.rel (%p121) target = $region28
    $region27: #{_lambda_.3} parent=5 // pred_region
      %s125 = ssub.s32 %s8, 1
      %p126 = scmp.lt.s32.totalorder %s13, 1
      %s127 = scalar_select %p126, %s13, 1
      %s128 = smul.addr %s127, 8
      %s129 = scalar_lea.vmem %s0, %s128
      %p130 = pneg %p34
      %p131 = pneg %p31
      %p132 = scmp.lt.s32.totalorder %s13, 1
      %s133 = scalar_select %p132, %s13, 1
      %s134 = smul.addr %s133, 8
      %s135 = scalar_lea.vmem %s1, %s134
      %p136 = pneg %p60
      %p137 = pneg %p57
      %p138 = pneg %p86
      %p139 = pneg %p83
      %p140 = scmp.lt.s32.totalorder %s13, 1
      %s141 = scalar_select %p140, %s13, 1
      %s142 = smul.addr %s141, 8
      %s143 = scalar_lea.vmem %s2, %s142
      %p144 = scmp.lt.s32.totalorder %s13, 1
      %s145 = scalar_select %p144, %s13, 1
      %s146 = smul.addr %s145, 8
      %s147 = scalar_lea.vmem %s0, %s146
      %p148 = scmp.lt.s32.totalorder %s13, 1
      %s149 = scalar_select %p148, %s13, 1
      %s150 = smul.addr %s149, 8
      %s151 = scalar_lea.vmem %s1, %s150
      %p152 = scmp.lt.s32.totalorder %s13, 1
      %s153 = scalar_select %p152, %s13, 1
      %s154 = smul.addr %s153, 8
      %s155 = scalar_lea.vmem %s2, %s154
      %v156 = vld [vmem:[%s147] sm:$0xff]
      %v157 = vld [vmem:[%s151] sm:$0xff]
      %v158 = vadd.f32 %v156, %v157
      %159 = vst [vmem:[%s155] sm:$0xff] %v158
      %p160 = scmp.lt.s32.totalorder %s13, 1
      %s161 = scalar_select %p160, %s13, 1
      %s162 = smul.addr %s161, 8
      %s163 = scalar_lea.vmem %s2, %s162
      // Predicated region
      $region29: #{_lambda_.3} parent=27 // pred_check
        %p164 = pneg %p83
      $region30: #{_lambda_.3} parent=27 // pred_check_branch
        %166 = sbr.rel (%p164) target = $region32
      $region31: #{_lambda_.3} parent=27 // pred_region
        _
      $region32: #{_lambda_.3} parent=27 // pred_fallthru
        _
    $region28: #{_lambda_.3} parent=5 // pred_fallthru
      _
    %p167 = scmp.le.s32.totalorder 2, %s8
    // Predicated region
    $region33: #{_lambda_.3} parent=5 // pred_check
      %p168 = pneg %p167
    $region34: #{_lambda_.3} parent=5 // pred_check_branch
      %170 = sbr.rel (%p168) target = $region36
    $region35: #{_lambda_.3} parent=5 // pred_region
      %s171 = ssub.s32 %s8, 2
      // Predicated region
      $region37: #{_lambda_.3} parent=35 // pred_check
        %p172 = pneg %p89
      $region38: #{_lambda_.3} parent=35 // pred_check_branch
        %174 = sbr.rel (%p172) target = $region40
      $region39: #{_lambda_.3} parent=35 // pred_region
        %p175 = scmp.lt.s32.totalorder %s14, 1
        %s176 = scalar_select %p175, %s14, 1
        %s177 = smul.addr %s176, 8
        %s178 = scalar_lea.vmem %s2, %s177
      $region40: #{_lambda_.3} parent=35 // pred_fallthru
        _
    $region36: #{_lambda_.3} parent=5 // pred_fallthru
      _
  $region6: #{_lambda_.3} parent=0 // loop_footer
    %s12 = sadd.s32 1, %s8
  $region7: #{_lambda_.3} parent=0 // loop_footer_branch
    %7 = sbr.rel target = $region3
  $region8: #{_lambda_.3} parent=0 // loop_exit
    _

</llo_original>
